<compile_context>
chip_gen: v7x
topology: tpu7x:2x2x1
jax: 0.10.0
libtpu: 0.0.40
codegen_flags: <defaults>
</compile_context>

<pallas_src>
import jax
import jax.numpy as jnp
from jax.experimental import pallas as pl
from jax.experimental.pallas import tpu as pltpu


def _alpha_loss_kernel(y_value_ref, value_ref, out_ref):
    # Elementwise squared difference on the current VMEM tile (VPU).
    diff = value_ref[...] - y_value_ref[...]
    out_ref[...] = diff * diff


def _pick_lanes(total: int) -> int:
    """Widest lane-dense last dim (multiple of 128) that divides `total`."""
    for cand in (8192, 4096, 2048, 1024, 512, 256, 128):
        if total % cand == 0:
            return cand
    return 128  # caller pads to a multiple of 128


def alpha_loss(
    y_value: jax.Array,
    value: jax.Array,
    *,
    min_pallas_elements: int = 16384,
    force_pallas: bool = False,
) -> jax.Array:
    """Computes (value - y_value)**2 elementwise with a Pallas TPU kernel.

    Inputs must have identical shapes (matches the reference, which uses
    same-shaped tensors).
    """
    assert y_value.shape == value.shape, "inputs must have the same shape"
    orig_shape = y_value.shape
    dtype = jnp.result_type(y_value.dtype, value.dtype)

    total = 1
    for d in orig_shape:
        total *= d

    # For genuinely small slabs (e.g. the real AlphaZero value head: batch x 1)
    # a pallas_call's launch/pipeline-prime cost dominates; let XLA fuse it.
    if total < min_pallas_elements and not force_pallas:
        yv = y_value.astype(dtype)
        v = value.astype(dtype)
        return (v - yv) ** 2

    itemsize = jnp.dtype(dtype).itemsize
    lanes = _pick_lanes(total)
    needs_pad = (total % lanes) != 0  # only possible when lanes == 128

    if needs_pad:
        rows = pl.cdiv(total, lanes)
        padded_total = rows * lanes
    else:
        rows = total // lanes
        padded_total = total

    # Sublane packing: 8 rows/vreg for 32-bit, 16 for 16-bit, 32 for 8-bit.
    sublane = {1: 32, 2: 16, 4: 8}.get(itemsize, 8)

    # ~2 MiB per operand per grid step -> 3 operands x 2 buffers = 12 MiB VMEM,
    # amortizes the ~0.35 us per-step overhead while fitting every generation's
    # default scoped VMEM (16 MiB v5e, 32 MiB v6e/v7x).
    target_block_bytes = 2 * 1024 * 1024
    tile_rows = max(sublane, (target_block_bytes // (lanes * itemsize)))
    tile_rows = max(sublane, (tile_rows // sublane) * sublane)
    if tile_rows >= rows:
        tile_rows = rows  # single block spans the full (possibly odd) row dim

    def _prep(x):
        x = x.astype(dtype).reshape(-1)
        if needs_pad:
            x = jnp.pad(x, (0, padded_total - total))
        return x.reshape(rows, lanes)

    yv2d = _prep(y_value)
    v2d = _prep(value)

    grid = (pl.cdiv(rows, tile_rows),)
    block = pl.BlockSpec((tile_rows, lanes), lambda i: (i, 0))

    out2d = pl.pallas_call(
        _alpha_loss_kernel,
        out_shape=jax.ShapeDtypeStruct((rows, lanes), dtype),
        grid=grid,
        in_specs=[block, block],
        out_specs=block,
        compiler_params=pltpu.CompilerParams(
            dimension_semantics=("parallel",),
        ),
    )(yv2d, v2d)

    if needs_pad:
        return out2d.reshape(-1)[:total].reshape(orig_shape)
    return out2d.reshape(orig_shape)


if __name__ == "__main__":
    key = jax.random.PRNGKey(0)
    k1, k2, k3, k4 = jax.random.split(key, 4)

    # Case 1: small shape consistent with a value-head output (forced through
    # the Pallas kernel so the kernel path itself is exercised and verified).
    y_small = jax.random.normal(k1, (2, 16), dtype=jnp.float32)
    v_small = jax.random.normal(k2, (2, 16), dtype=jnp.float32)
    out_small = alpha_loss(y_small, v_small, force_pallas=True)
    jax.block_until_ready(out_small)
    ref_small = (v_small - y_small) ** 2
    assert out_small.shape == ref_small.shape, (out_small.shape, ref_small.shape)
    assert jnp.allclose(out_small, ref_small, atol=1e-6, rtol=1e-6), "small case mismatch"

    # Case 2: a larger slab that naturally takes the Pallas path and exercises
    # the wide-lane (8192) reshape, bf16 sublane packing, and big-tile logic.
    y_big = jax.random.normal(k3, (64, 2048), dtype=jnp.bfloat16)
    v_big = jax.random.normal(k4, (64, 2048), dtype=jnp.bfloat16)
    out_big = alpha_loss(y_big, v_big)
    jax.block_until_ready(out_big)
    ref_big = (v_big - y_big) ** 2
    assert out_big.shape == ref_big.shape, (out_big.shape, ref_big.shape)
    assert jnp.allclose(
        out_big.astype(jnp.float32), ref_big.astype(jnp.float32), atol=1e-2, rtol=1e-2
    ), "large case mismatch"

    print("KERNEL_OK")
</pallas_src>

<mosaic_0001>
module attributes {stable_mosaic.version = 11 : i64} {
  func.func @_alpha_loss_kernel(%arg0: i32, %arg1: memref<1x128xf32, #tpu.memory_space<vmem>>, %arg2: memref<1x128xf32, #tpu.memory_space<vmem>>, %arg3: memref<1x128xf32, #tpu.memory_space<vmem>>) attributes {dimension_semantics = [#tpu.dimension_semantics<parallel>], iteration_bounds = array<i64: 1>, scalar_prefetch = 0 : i64, scratch_operands = 0 : i64, tpu.core_type = #tpu.core_type<tc>, window_params = [{transform_indices = @transform_0, window_bounds = array<i64: 1, 128>}, {transform_indices = @transform_1, window_bounds = array<i64: 1, 128>}, {transform_indices = @transform_2, window_bounds = array<i64: 1, 128>}]} {
    %c0 = arith.constant 0 : index
    %c0_0 = arith.constant 0 : index
    %0 = vector.load %arg2[%c0, %c0_0] : memref<1x128xf32, #tpu.memory_space<vmem>>, vector<1x128xf32>
    %c0_1 = arith.constant 0 : index
    %c0_2 = arith.constant 0 : index
    %1 = vector.load %arg1[%c0_1, %c0_2] : memref<1x128xf32, #tpu.memory_space<vmem>>, vector<1x128xf32>
    %2 = arith.subf %0, %1 : vector<1x128xf32>
    %3 = arith.mulf %2, %2 : vector<1x128xf32>
    %c0_3 = arith.constant 0 : index
    %c0_4 = arith.constant 0 : index
    %4 = vector.load %arg3[%c0_3, %c0_4] : memref<1x128xf32, #tpu.memory_space<vmem>>, vector<1x128xf32>
    tpu.vector_store %arg3[%c0_3, %c0_4], %3 {strides = array<i32>} : memref<1x128xf32, #tpu.memory_space<vmem>>, vector<1x128xf32>,
    return
  }
  func.func @transform_0(%arg0: i32) -> (i32, i32) {
    %c0_i32 = arith.constant 0 : i32
    %c0_i32_0 = arith.constant 0 : i32
    return %arg0, %c0_i32 : i32, i32
  }
  func.func @transform_1(%arg0: i32) -> (i32, i32) {
    %c0_i32 = arith.constant 0 : i32
    %c0_i32_0 = arith.constant 0 : i32
    return %arg0, %c0_i32 : i32, i32
  }
  func.func @transform_2(%arg0: i32) -> (i32, i32) {
    %c0_i32 = arith.constant 0 : i32
    %c0_i32_0 = arith.constant 0 : i32
    return %arg0, %c0_i32 : i32, i32
  }
}

</mosaic_0001>

<llo_original>
// kernel: tpu_custom_call.1
$region0: #{tpu_custom_call.1}
  #allocation0 [shape = 'u32[]', space=smem, size = 0x4, offset = 0x4, fixed_abs, tag = 'smem constant byte address 0x4 - core index']
  #allocation1 [shape = 'u32[144,128]{1,0:T(1,128)}', space=vmem, size = 0x12000, scoped, tag = 'internal scratch']
  %s0 = inlined_call_operand.hbm [shape: f32[1,128], index: 0, kind: input, shape index: {}]
  %s1 = inlined_call_operand.vmem [shape: f32[1,128], index: 1, kind: input, shape index: {}]
  %s2 = inlined_call_operand.hbm [shape: f32[1,128], index: 2, kind: output, shape index: {}]
  %s3 = sld [smem:[#allocation0]]
  $region22: #{tpu_custom_call.1} parent=0
    _
  %s5 = ssub.s32 1, %s3
  %s6 = scalar_select 0, %s5, %s3
  $region1: #{tpu_custom_call.1} parent=0
    #allocation2 [shape = 'u8[512]{0}', space=vmem, size = 0x400, scoped, tag = 'input window, operand 0, single buffered']
    #allocation3 [shape = 's32[1]{0}', space=sflag, size = 0x4, scoped, tag = 'scoped memory for tpu_custom_call.1']
    #allocation4 [shape = 's32[1]{0}', space=sflag, size = 0x4, scoped, tag = 'scoped memory for tpu_custom_call.1']
    #allocation5 [shape = 'u8[512]{0}', space=vmem, size = 0x400, scoped, tag = 'output window, operand 0, single buffered']
    %7 = vsyncpa [#allocation3], 0
    %8 = vsyncpa [#allocation4], 0
    // Predicated region
    $region2: #{tpu_custom_call.1} parent=1 // pred_check
      _
    $region3: #{tpu_custom_call.1} parent=1 // pred_check_branch
      %10 = sbr.rel (0) target = $region5
    $region4: #{tpu_custom_call.1} parent=1 // pred_region
      %s12 = ssub.s32 16, 16
      %13 = vsyncadd [#allocation3], %s12
      %s15 = sshll.u32 [#allocation2], 4
      %s16 = int_to_ptr.vmem [resolvable:$true] %s15
      %18 = dma.hbm_to_vmem [thread:$0]  %s0, 16, %s16, [#allocation3]
    $region5: #{tpu_custom_call.1} parent=1 // pred_fallthru
      _
    // Predicated region
    $region6: #{tpu_custom_call.1} parent=1 // pred_check
      _
    $region7: #{tpu_custom_call.1} parent=1 // pred_check_branch
      %20 = sbr.rel (0) target = $region9
    $region8: #{tpu_custom_call.1} parent=1 // pred_region
      _
    $region9: #{tpu_custom_call.1} parent=1 // pred_fallthru
      _
    // Predicated region
    $region10: #{tpu_custom_call.1} parent=1 // pred_check
      _
    $region11: #{tpu_custom_call.1} parent=1 // pred_check_branch
      %22 = sbr.rel (0) target = $region13
    $region12: #{tpu_custom_call.1} parent=1 // pred_region
      %23 = dma.done [#allocation3], 16
    $region13: #{tpu_custom_call.1} parent=1 // pred_fallthru
      _
    %v24 = vld [vmem:[%s1] sm:$0x1]
    %v25 = vld [vmem:[#allocation2] sm:$0x1]
    %v26 = vsub.f32 %v24, %v25
    %v27 = vmul.f32 %v26, %v26
    %28 = vst [vmem:[#allocation5] sm:$0x1] %v27
    // Predicated region
    $region14: #{tpu_custom_call.1} parent=1 // pred_check
      _
    $region15: #{tpu_custom_call.1} parent=1 // pred_check_branch
      %30 = sbr.rel (0) target = $region17
    $region16: #{tpu_custom_call.1} parent=1 // pred_region
      %s32 = ssub.s32 16, 16
      %33 = vsyncadd [#allocation4], %s32
      %s35 = sshll.u32 [#allocation5], 4
      %s36 = int_to_ptr.vmem [resolvable:$true] %s35
      %38 = dma.vmem_to_hbm [thread:$0]  %s36, 16, %s2, [#allocation4]
    $region17: #{tpu_custom_call.1} parent=1 // pred_fallthru
      _
    // Predicated region
    $region18: #{tpu_custom_call.1} parent=1 // pred_check
      _
    $region19: #{tpu_custom_call.1} parent=1 // pred_check_branch
      %40 = sbr.rel (0) target = $region21
    $region20: #{tpu_custom_call.1} parent=1 // pred_region
      %41 = dma.done [#allocation4], 16
    $region21: #{tpu_custom_call.1} parent=1 // pred_fallthru
      _
    %42 = vsyncpa [#allocation3], 1
    %43 = vsyncpa [#allocation4], 1

</llo_original>
